<compile_context>
chip_gen: v7x
topology: tpu7x:2x2x1
jax: 0.10.0
libtpu: 0.0.40
codegen_flags: <defaults>
</compile_context>

<pallas_src>
import math
from functools import reduce
from operator import mul

import jax
import jax.numpy as jnp
from jax.experimental import pallas as pl
from jax.experimental.pallas import tpu as pltpu


def _make_lif_kernel(a, b, c, threshold, u_rest, trace_decay, trace_scale):
    """LIF step kernel with all scalar parameters baked in as trace-time constants.

    Folded algebra (host side): with k = dt/tau,
        u_new = a*u + (c*I + b) + eff,   a = 1-k, b = u_rest*k, c = R*k
    """
    a = float(a); b = float(b); c = float(c)
    threshold = float(threshold); u_rest = float(u_rest)
    trace_decay = float(trace_decay); trace_scale = float(trace_scale)

    def kernel(i_ref, eff_ref, u_init, tr_init, s_out, u_out, prev_out, tr_out):
        # Grid = (row_tile, t). u_out / tr_out / prev_out keep the same block index
        # across t, so they stay resident in VMEM (accumulator pattern) and are flushed
        # to HBM only once per row tile.
        @pl.when(pl.program_id(1) == 0)
        def _():
            u_out[...] = u_init[...]
            tr_out[...] = tr_init[...]

        u = a * u_out[...] + (c * i_ref[...] + b) + eff_ref[...]
        s = u > threshold
        sf = s.astype(jnp.float32)
        prev_out[...] = u                              # pre-reset potential (last t wins)
        u_out[...] = jnp.where(s, u_rest, u)           # reset spiking neurons
        tr_out[...] = tr_out[...] * trace_decay + trace_scale * sf
        s_out[...] = sf.astype(jnp.int8)               # spikes emitted in-kernel (1 B/elem)

    return kernel


class LIFPopulationPallas:
    """JAX/Pallas port of LIFPopulation.

    forward(traces, spike_effects)            : one simulation step (PyTorch-compatible).
    forward_sequence(traces_T, spike_eff_T)   : T fused steps in one pallas_call,
                                                returns bool spikes of shape (T, *shape).
    State is kept in padded lane-dense (rows, 128) slabs; potential / prev_potential /
    traces / s are lazy properties (reshape only on access).
    """

    COLS = 128

    def __init__(self, shape, tau_s=10.0, trace_scale=1.0, tau=10.0,
                 resistance=5.0, threshold=-50.0, rest_potential=-70.0, dt=0.001):
        self.shape = tuple(shape)
        self.n = reduce(mul, self.shape)
        self.tau_s = float(tau_s)
        self.trace_scale = float(trace_scale)
        self.tau = float(tau)
        self.resistance = float(resistance)
        self.threshold = float(threshold)
        self.rest_potential = float(rest_potential)
        self.dt = float(dt)
        self.step = 0

        # ---- slab layout: (rows, 128), rows rounded to 32 (int8-native sublane tile) ----
        cols = self.COLS
        rows = pl.cdiv(self.n, cols)
        rows = ((rows + 31) // 32) * 32

        # Generation-aware max tile: big tiles amortize grid-step overhead, but the
        # double-buffered footprint must fit v7x's 64 MiB VMEM.
        max_tile = 2048
        try:
            info = pltpu.get_tpu_info()
            if getattr(info, "vmem_capacity_bytes", 0) >= 100 * 1024 * 1024:
                max_tile = 4096       # v5e / v6e (128 MiB VMEM)
        except Exception:
            pass

        if rows > max_tile:
            tile = max_tile
        elif rows >= 64:
            # >=2 row tiles so the "parallel" axis can shard across v7x's 2 TensorCores.
            tile = max(32, ((rows // 2) // 32) * 32)
        else:
            tile = rows
        self._rows, self._cols, self._tile_rows = rows, cols, tile
        self._padded = rows * cols
        self._row_tiles = pl.cdiv(rows, tile)           # edge blocks, no row round-up waste

        # 7 f32 streams + 1 int8 stream per grid step, double buffered, + headroom.
        block_bytes = tile * cols * (7 * 4 + 1)
        self._vmem_limit = max(2 * block_bytes + (8 << 20), 16 << 20)

        # ---- scalar constants folded on the host ----
        k = self.dt / self.tau
        trace_decay = math.exp(-self.dt / self.tau_s)   # compute_decay()
        self._kernel = _make_lif_kernel(
            a=1.0 - k, b=self.rest_potential * k, c=self.resistance * k,
            threshold=self.threshold, u_rest=self.rest_potential,
            trace_decay=trace_decay, trace_scale=self.trace_scale)

        # ---- persistent state slabs (pad lanes sit at u_rest -> never spike) ----
        self._u_slab = jnp.full((rows, cols), self.rest_potential, jnp.float32)
        self._prev_slab = jnp.full((rows, cols), self.rest_potential, jnp.float32)
        self._tr_slab = jnp.zeros((rows, cols), jnp.float32)
        self._s_slab = jnp.zeros((1, rows, cols), jnp.int8)

        self._step_fns = {}                             # T -> jitted step fn

    # ------------------------------------------------------------------ build / run ----
    def _build_step(self, T):
        rows, cols, tile = self._rows, self._cols, self._tile_rows
        grid = (self._row_tiles, T)
        seq_spec = pl.BlockSpec((None, tile, cols), lambda i, t: (t, i, 0))   # per-t streams
        st_spec = pl.BlockSpec((tile, cols), lambda i, t: (i, 0))             # t-invariant state
        slab = jax.ShapeDtypeStruct((rows, cols), jnp.float32)

        call = pl.pallas_call(
            self._kernel,
            out_shape=(jax.ShapeDtypeStruct((T, rows, cols), jnp.int8),  # spikes per step
                       slab, slab, slab),                                # u, prev_u, traces
            grid=grid,
            in_specs=[seq_spec, seq_spec, st_spec, st_spec],
            out_specs=(seq_spec, st_spec, st_spec, st_spec),
            input_output_aliases={2: 1, 3: 3},           # u -> u_out, traces -> tr_out
            compiler_params=pltpu.CompilerParams(
                dimension_semantics=("parallel", "arbitrary"),
                vmem_limit_bytes=self._vmem_limit),
        )

        n, padded = self.n, self._padded

        def to_slabs(x):
            flat = jnp.reshape(x, (T, -1)).astype(jnp.float32)
            if padded != n:
                # TODO(synk): fold this pad into the pallas_call (allow_input_fusion) or
                # accept slab-layout inputs to avoid one extra HBM copy per input.
                flat = jnp.pad(flat, ((0, 0), (0, padded - n)))
            return jnp.reshape(flat, (T, rows, cols))

        def step_fn(traces_in, spike_effects, u_slab, tr_slab):
            return call(to_slabs(traces_in), to_slabs(spike_effects), u_slab, tr_slab)

        return jax.jit(step_fn, donate_argnums=(2, 3))

    def _run(self, traces_seq, spike_eff_seq, T):
        fn = self._step_fns.get(T)
        if fn is None:
            fn = self._step_fns[T] = self._build_step(T)
        (self._s_slab, self._u_slab,
         self._prev_slab, self._tr_slab) = fn(traces_seq, spike_eff_seq,
                                              self._u_slab, self._tr_slab)

    # -------------------------------------------------------------------- public API ----
    def forward(self, traces, spike_effects):
        """One simulation step. State is updated in place; read the lazy properties."""
        tr_in = jnp.reshape(jnp.asarray(traces, jnp.float32), (1,) + self.shape)
        eff = jnp.reshape(jnp.asarray(spike_effects, jnp.float32), (1,) + self.shape)
        self._run(tr_in, eff, 1)
        self.step += 1
        return None

    def forward_sequence(self, traces_seq, spike_effects_seq):
        """Run T fused timesteps in a single pallas_call (state stays VMEM-resident).

        Returns per-step spikes as bool with shape (T, *self.shape).
        """
        traces_seq = jnp.asarray(traces_seq, jnp.float32)
        eff_seq = jnp.asarray(spike_effects_seq, jnp.float32)
        T = traces_seq.shape[0]
        self._run(traces_seq, eff_seq, T)
        self.step += T
        s = self._s_slab.reshape(T, -1)[:, :self.n] > 0
        return s.reshape((T,) + self.shape)

    # ----------------------------------------------------------------- lazy views -------
    def _from_slab(self, slab):
        return slab.reshape(-1)[:self.n].reshape(self.shape)

    @property
    def potential(self):
        return self._from_slab(self._u_slab)

    @property
    def prev_potential(self):
        return self._from_slab(self._prev_slab)

    @property
    def traces(self):
        return self._from_slab(self._tr_slab)

    @property
    def s(self):
        return self._from_slab(self._s_slab[-1]) > 0

    def reset_state_variables(self):
        rows, cols = self._rows, self._cols
        self._u_slab = jnp.full((rows, cols), self.rest_potential, jnp.float32)
        self._prev_slab = jnp.full((rows, cols), self.rest_potential, jnp.float32)
        self._tr_slab = jnp.zeros((rows, cols), jnp.float32)
        self._s_slab = jnp.zeros((1, rows, cols), jnp.int8)
        self.step = 0


def _reference_step(pop_params, u, traces_state, traces_in, spike_effects):
    """Pure-JAX reference mirroring the PyTorch forward, for validation."""
    (u_rest, R, dt, tau, thr, scale, tau_s) = pop_params
    du = (-(u - u_rest) + R * traces_in) * dt / tau
    u_new = u + du + spike_effects
    s = u_new > thr
    prev_u = u_new
    u_reset = jnp.where(s, u_rest, u_new)
    trace_decay = jnp.exp(-dt / tau_s)
    tr_new = traces_state * trace_decay + scale * s.astype(jnp.float32)
    return s, u_reset, prev_u, tr_new


if __name__ == "__main__":
    shape = (4, 16, 16)          # population topology (channels x H x W)
    T = 4
    key = jax.random.PRNGKey(0)
    keys = jax.random.split(key, 2 * T)
    traces_seq = jnp.stack(
        [jax.random.normal(keys[t], shape, dtype=jnp.float32) * 2.0 for t in range(T)])
    eff_seq = jnp.stack(
        [jax.random.uniform(keys[T + t], shape, dtype=jnp.float32) * 40.0 for t in range(T)])

    pop = LIFPopulationPallas(shape)
    params = (pop.rest_potential, pop.resistance, pop.dt, pop.tau,
              pop.threshold, pop.trace_scale, pop.tau_s)

    # ---- single-step path (module-compatible API), 2 steps ----
    u_ref = jnp.full(shape, pop.rest_potential, dtype=jnp.float32)
    tr_ref = jnp.zeros(shape, dtype=jnp.float32)
    for t in range(2):
        pop.forward(traces_seq[t], eff_seq[t])
        jax.block_until_ready(pop._u_slab)
        s_ref, u_ref, prev_ref, tr_ref = _reference_step(
            params, u_ref, tr_ref, traces_seq[t], eff_seq[t])
        assert bool(jnp.all(pop.s == s_ref))
        assert bool(jnp.allclose(pop.potential, u_ref, rtol=1e-5, atol=1e-4))
        assert bool(jnp.allclose(pop.prev_potential, prev_ref, rtol=1e-5, atol=1e-4))
        assert bool(jnp.allclose(pop.traces, tr_ref, rtol=1e-5, atol=1e-4))

    # ---- fused multi-step path (T timesteps in one pallas_call) ----
    pop2 = LIFPopulationPallas(shape)
    s_all = pop2.forward_sequence(traces_seq, eff_seq)
    jax.block_until_ready(s_all)

    u_ref = jnp.full(shape, pop.rest_potential, dtype=jnp.float32)
    tr_ref = jnp.zeros(shape, dtype=jnp.float32)
    for t in range(T):
        s_ref, u_ref, prev_ref, tr_ref = _reference_step(
            params, u_ref, tr_ref, traces_seq[t], eff_seq[t])
        assert bool(jnp.all(s_all[t] == s_ref))
    assert bool(jnp.allclose(pop2.potential, u_ref, rtol=1e-5, atol=1e-4))
    assert bool(jnp.allclose(pop2.prev_potential, prev_ref, rtol=1e-5, atol=1e-4))
    assert bool(jnp.allclose(pop2.traces, tr_ref, rtol=1e-5, atol=1e-4))

    print("KERNEL_OK")
</pallas_src>

<mosaic_0001>
module attributes {stable_mosaic.version = 11 : i64} {
  func.func @kernel(%arg0: i32, %arg1: i32, %arg2: memref<1x32x128xf32, #tpu.memory_space<vmem>>, %arg3: memref<1x32x128xf32, #tpu.memory_space<vmem>>, %arg4: memref<32x128xf32, #tpu.memory_space<vmem>>, %arg5: memref<32x128xf32, #tpu.memory_space<vmem>>, %arg6: memref<1x32x128xi8, #tpu.memory_space<vmem>>, %arg7: memref<32x128xf32, #tpu.memory_space<vmem>>, %arg8: memref<32x128xf32, #tpu.memory_space<vmem>>, %arg9: memref<32x128xf32, #tpu.memory_space<vmem>>) attributes {dimension_semantics = [#tpu.dimension_semantics<parallel>, #tpu.dimension_semantics<arbitrary>], iteration_bounds = array<i64: 1, 1>, scalar_prefetch = 0 : i64, scratch_operands = 0 : i64, tpu.core_type = #tpu.core_type<tc>, window_params = [{transform_indices = @transform_0, window_bounds = array<i64: 1, 32, 128>}, {transform_indices = @transform_1, window_bounds = array<i64: 1, 32, 128>}, {transform_indices = @transform_2, window_bounds = array<i64: 32, 128>}, {transform_indices = @transform_3, window_bounds = array<i64: 32, 128>}, {transform_indices = @transform_4, window_bounds = array<i64: 1, 32, 128>}, {transform_indices = @transform_5, window_bounds = array<i64: 32, 128>}, {transform_indices = @transform_6, window_bounds = array<i64: 32, 128>}, {transform_indices = @transform_7, window_bounds = array<i64: 32, 128>}]} {
    %c0_i32 = arith.constant 0 : i32
    %0 = arith.cmpi eq, %arg1, %c0_i32 : i32
    %1 = arith.extui %0 : i1 to i32
    %c0_i32_0 = arith.constant 0 : i32
    %2 = arith.cmpi ne, %1, %c0_i32_0 : i32
    scf.if %2 {
      %c0_25 = arith.constant 0 : index
      %c0_26 = arith.constant 0 : index
      %35 = vector.load %arg4[%c0_25, %c0_26] : memref<32x128xf32, #tpu.memory_space<vmem>>, vector<32x128xf32>
      %c0_27 = arith.constant 0 : index
      %c0_28 = arith.constant 0 : index
      %36 = vector.load %arg7[%c0_27, %c0_28] : memref<32x128xf32, #tpu.memory_space<vmem>>, vector<32x128xf32>
      tpu.vector_store %arg7[%c0_27, %c0_28], %35 {strides = array<i32>} : memref<32x128xf32, #tpu.memory_space<vmem>>, vector<32x128xf32>,
      %c0_29 = arith.constant 0 : index
      %c0_30 = arith.constant 0 : index
      %37 = vector.load %arg5[%c0_29, %c0_30] : memref<32x128xf32, #tpu.memory_space<vmem>>, vector<32x128xf32>
      %c0_31 = arith.constant 0 : index
      %c0_32 = arith.constant 0 : index
      %38 = vector.load %arg9[%c0_31, %c0_32] : memref<32x128xf32, #tpu.memory_space<vmem>>, vector<32x128xf32>
      tpu.vector_store %arg9[%c0_31, %c0_32], %37 {strides = array<i32>} : memref<32x128xf32, #tpu.memory_space<vmem>>, vector<32x128xf32>,
    } else {
    }
    %c0 = arith.constant 0 : index
    %c0_1 = arith.constant 0 : index
    %3 = vector.load %arg7[%c0, %c0_1] : memref<32x128xf32, #tpu.memory_space<vmem>>, vector<32x128xf32>
    %cst = arith.constant 0.999899983 : f32
    %4 = vector.broadcast %cst : f32 to vector<32x128xf32>
    %5 = arith.mulf %4, %3 : vector<32x128xf32>
    %c0_2 = arith.constant 0 : index
    %c0_3 = arith.constant 0 : index
    %c0_4 = arith.constant 0 : index
    %6 = vector.load %arg2[%c0_2, %c0_3, %c0_4] : memref<1x32x128xf32, #tpu.memory_space<vmem>>, vector<1x32x128xf32>
    %7 = vector.shape_cast %6 : vector<1x32x128xf32> to vector<32x128xf32>
    %cst_5 = arith.constant 5.000000e-04 : f32
    %8 = vector.broadcast %cst_5 : f32 to vector<32x128xf32>
    %9 = arith.mulf %8, %7 : vector<32x128xf32>
    %cst_6 = arith.constant -7.000000e-03 : f32
    %10 = vector.broadcast %cst_6 : f32 to vector<32x128xf32>
    %11 = arith.addf %9, %10 : vector<32x128xf32>
    %12 = arith.addf %5, %11 : vector<32x128xf32>
    %c0_7 = arith.constant 0 : index
    %c0_8 = arith.constant 0 : index
    %c0_9 = arith.constant 0 : index
    %13 = vector.load %arg3[%c0_7, %c0_8, %c0_9] : memref<1x32x128xf32, #tpu.memory_space<vmem>>, vector<1x32x128xf32>
    %14 = vector.shape_cast %13 : vector<1x32x128xf32> to vector<32x128xf32>
    %15 = arith.addf %12, %14 : vector<32x128xf32>
    %cst_10 = arith.constant -5.000000e+01 : f32
    %16 = vector.broadcast %cst_10 : f32 to vector<32x128xf32>
    %17 = arith.cmpf ogt, %15, %16 : vector<32x128xf32>
    %18 = arith.extui %17 : vector<32x128xi1> to vector<32x128xi32>
    %19 = arith.sitofp %18 : vector<32x128xi32> to vector<32x128xf32>
    %c0_11 = arith.constant 0 : index
    %c0_12 = arith.constant 0 : index
    %20 = vector.load %arg8[%c0_11, %c0_12] : memref<32x128xf32, #tpu.memory_space<vmem>>, vector<32x128xf32>
    tpu.vector_store %arg8[%c0_11, %c0_12], %15 {strides = array<i32>} : memref<32x128xf32, #tpu.memory_space<vmem>>, vector<32x128xf32>,
    %cst_13 = arith.constant -7.000000e+01 : f32
    %21 = vector.broadcast %cst_13 : f32 to vector<32x128xf32>
    %22 = arith.select %17, %21, %15 : vector<32x128xi1>, vector<32x128xf32>
    %c0_14 = arith.constant 0 : index
    %c0_15 = arith.constant 0 : index
    %23 = vector.load %arg7[%c0_14, %c0_15] : memref<32x128xf32, #tpu.memory_space<vmem>>, vector<32x128xf32>
    tpu.vector_store %arg7[%c0_14, %c0_15], %22 {strides = array<i32>} : memref<32x128xf32, #tpu.memory_space<vmem>>, vector<32x128xf32>,
    %c0_16 = arith.constant 0 : index
    %c0_17 = arith.constant 0 : index
    %24 = vector.load %arg9[%c0_16, %c0_17] : memref<32x128xf32, #tpu.memory_space<vmem>>, vector<32x128xf32>
    %cst_18 = arith.constant 0.999899983 : f32
    %25 = vector.broadcast %cst_18 : f32 to vector<32x128xf32>
    %26 = arith.mulf %24, %25 : vector<32x128xf32>
    %cst_19 = arith.constant 1.000000e+00 : f32
    %27 = vector.broadcast %cst_19 : f32 to vector<32x128xf32>
    %28 = arith.mulf %27, %19 : vector<32x128xf32>
    %29 = arith.addf %26, %28 : vector<32x128xf32>
    %c0_20 = arith.constant 0 : index
    %c0_21 = arith.constant 0 : index
    %30 = vector.load %arg9[%c0_20, %c0_21] : memref<32x128xf32, #tpu.memory_space<vmem>>, vector<32x128xf32>
    tpu.vector_store %arg9[%c0_20, %c0_21], %29 {strides = array<i32>} : memref<32x128xf32, #tpu.memory_space<vmem>>, vector<32x128xf32>,
    %31 = arith.fptosi %19 : vector<32x128xf32> to vector<32x128xi8>
    %c0_22 = arith.constant 0 : index
    %c0_23 = arith.constant 0 : index
    %c0_24 = arith.constant 0 : index
    %32 = vector.load %arg6[%c0_22, %c0_23, %c0_24] : memref<1x32x128xi8, #tpu.memory_space<vmem>>, vector<1x32x128xi8>
    %33 = vector.shape_cast %32 : vector<1x32x128xi8> to vector<32x128xi8>
    %34 = vector.shape_cast %31 : vector<32x128xi8> to vector<1x32x128xi8>
    tpu.vector_store %arg6[%c0_22, %c0_23, %c0_24], %34 {strides = array<i32>} : memref<1x32x128xi8, #tpu.memory_space<vmem>>, vector<1x32x128xi8>,
    return
  }
  func.func @transform_0(%arg0: i32, %arg1: i32) -> (i32, i32, i32) {
    %c0_i32 = arith.constant 0 : i32
    %c0_i32_0 = arith.constant 0 : i32
    return %arg1, %arg0, %c0_i32 : i32, i32, i32
  }
  func.func @transform_1(%arg0: i32, %arg1: i32) -> (i32, i32, i32) {
    %c0_i32 = arith.constant 0 : i32
    %c0_i32_0 = arith.constant 0 : i32
    return %arg1, %arg0, %c0_i32 : i32, i32, i32
  }
  func.func @transform_2(%arg0: i32, %arg1: i32) -> (i32, i32) {
    %c0_i32 = arith.constant 0 : i32
    %c0_i32_0 = arith.constant 0 : i32
    return %arg0, %c0_i32 : i32, i32
  }
  func.func @transform_3(%arg0: i32, %arg1: i32) -> (i32, i32) {
    %c0_i32 = arith.constant 0 : i32
    %c0_i32_0 = arith.constant 0 : i32
    return %arg0, %c0_i32 : i32, i32
  }
  func.func @transform_4(%arg0: i32, %arg1: i32) -> (i32, i32, i32) {
    %c0_i32 = arith.constant 0 : i32
    %c0_i32_0 = arith.constant 0 : i32
    return %arg1, %arg0, %c0_i32 : i32, i32, i32
  }
  func.func @transform_5(%arg0: i32, %arg1: i32) -> (i32, i32) {
    %c0_i32 = arith.constant 0 : i32
    %c0_i32_0 = arith.constant 0 : i32
    return %arg0, %c0_i32 : i32, i32
  }
  func.func @transform_6(%arg0: i32, %arg1: i32) -> (i32, i32) {
    %c0_i32 = arith.constant 0 : i32
    %c0_i32_0 = arith.constant 0 : i32
    return %arg0, %c0_i32 : i32, i32
  }
  func.func @transform_7(%arg0: i32, %arg1: i32) -> (i32, i32) {
    %c0_i32 = arith.constant 0 : i32
    %c0_i32_0 = arith.constant 0 : i32
    return %arg0, %c0_i32 : i32, i32
  }
}

</mosaic_0001>

<llo_original>
// kernel: step_fn.1
$region0: #{step_fn.1}
  #allocation0 [shape = 'u32[]', space=smem, size = 0x4, offset = 0x4, fixed_abs, tag = 'smem constant byte address 0x4 - core index']
  #allocation1 [shape = 'u32[144,128]{1,0:T(1,128)}', space=vmem, size = 0x12000, scoped, tag = 'internal scratch']
  %s0 = inlined_call_operand.vmem [shape: f32[1,32,128], index: 0, kind: input, shape index: {}]
  %s1 = inlined_call_operand.vmem [shape: f32[1,32,128], index: 1, kind: input, shape index: {}]
  %s2 = inlined_call_operand.vmem [shape: f32[32,128], index: 2, kind: input, shape index: {}, may-alias: {2,5}]
  %s3 = inlined_call_operand.vmem [shape: f32[32,128], index: 3, kind: input, shape index: {}, may-alias: {3,7}]
  %s4 = inlined_call_operand.hbm [shape: s8[1,32,128], index: 4, kind: output, shape index: {0}]
  %s5 = inlined_call_operand.vmem [shape: f32[32,128], index: 5, kind: output, shape index: {1}, may-alias: {2,5}]
  %s6 = inlined_call_operand.hbm [shape: f32[32,128], index: 6, kind: output, shape index: {2}]
  %s7 = inlined_call_operand.vmem [shape: f32[32,128], index: 7, kind: output, shape index: {3}, may-alias: {3,7}]
  %8 = xla_tuple %s4, %s5, %s6, %s7
  %s9 = sld [smem:[#allocation0]]
  $region54: #{step_fn.1} parent=0
    _
  %s11 = ssub.s32 1, %s9
  %s12 = scalar_select 0, %s11, %s9
  $region1: #{step_fn.1} parent=0
    #allocation2 [shape = 'u8[4096]{0}', space=vmem, size = 0x1000, scoped, tag = 'output window, operand 0, single buffered']
    #allocation3 [shape = 's32[1]{0}', space=sflag, size = 0x4, scoped, tag = 'scoped memory for step_fn.1']
    #allocation4 [shape = 'u8[16384]{0}', space=vmem, size = 0x4000, scoped, tag = 'output window, operand 2, single buffered']
    #allocation5 [shape = 's32[1]{0}', space=sflag, size = 0x4, scoped, tag = 'scoped memory for step_fn.1']
    %13 = vsyncpa [#allocation3], 0
    %14 = vsyncpa [#allocation5], 0
    // Predicated region
    $region2: #{step_fn.1} parent=1 // pred_check
      _
    $region3: #{step_fn.1} parent=1 // pred_check_branch
      %16 = sbr.rel (0) target = $region5
    $region4: #{step_fn.1} parent=1 // pred_region
      _
    $region5: #{step_fn.1} parent=1 // pred_fallthru
      _
    // Predicated region
    $region6: #{step_fn.1} parent=1 // pred_check
      _
    $region7: #{step_fn.1} parent=1 // pred_check_branch
      %18 = sbr.rel (0) target = $region9
    $region8: #{step_fn.1} parent=1 // pred_region
      _
    $region9: #{step_fn.1} parent=1 // pred_fallthru
      _
    // Predicated region
    $region10: #{step_fn.1} parent=1 // pred_check
      _
    $region11: #{step_fn.1} parent=1 // pred_check_branch
      %20 = sbr.rel (0) target = $region13
    $region12: #{step_fn.1} parent=1 // pred_region
      _
    $region13: #{step_fn.1} parent=1 // pred_fallthru
      _
    // Predicated region
    $region14: #{step_fn.1} parent=1 // pred_check
      _
    $region15: #{step_fn.1} parent=1 // pred_check_branch
      %22 = sbr.rel (0) target = $region17
    $region16: #{step_fn.1} parent=1 // pred_region
      _
    $region17: #{step_fn.1} parent=1 // pred_fallthru
      _
    %p23 = scmp.eq.s32.totalorder 0, 0
    // Predicated region
    $region18: #{step_fn.1} parent=1 // pred_check
      %p24 = pneg %p23
    $region19: #{step_fn.1} parent=1 // pred_check_branch
      %26 = sbr.rel (%p24) target = $region21
    $region20: #{step_fn.1} parent=1 // pred_region
      %v27 = vld [vmem:[%s2] sm:$0xff]
      %v28 = vld [vmem:[%s2 + $0x8] sm:$0xff]
      %v29 = vld [vmem:[%s2 + $0x10] sm:$0xff]
      %v30 = vld [vmem:[%s2 + $0x18] sm:$0xff]
      %31 = vst [vmem:[%s5] sm:$0xff] %v27
      %32 = vst [vmem:[%s5 + $0x8] sm:$0xff] %v28
      %33 = vst [vmem:[%s5 + $0x10] sm:$0xff] %v29
      %34 = vst [vmem:[%s5 + $0x18] sm:$0xff] %v30
      %v35 = vld [vmem:[%s3] sm:$0xff]
      %v36 = vld [vmem:[%s3 + $0x8] sm:$0xff]
      %v37 = vld [vmem:[%s3 + $0x10] sm:$0xff]
      %v38 = vld [vmem:[%s3 + $0x18] sm:$0xff]
      %39 = vst [vmem:[%s7] sm:$0xff] %v35
      %40 = vst [vmem:[%s7 + $0x8] sm:$0xff] %v36
      %41 = vst [vmem:[%s7 + $0x10] sm:$0xff] %v37
      %42 = vst [vmem:[%s7 + $0x18] sm:$0xff] %v38
    $region21: #{step_fn.1} parent=1 // pred_fallthru
      _
    %v43 = vld [vmem:[%s5] sm:$0xff]
    %v44 = vld [vmem:[%s5 + $0x8] sm:$0xff]
    %v45 = vld [vmem:[%s5 + $0x10] sm:$0xff]
    %v46 = vld [vmem:[%s5 + $0x18] sm:$0xff]
    %v47 = vmul.f32 %v43, 0.9999
    %v48 = vmul.f32 %v44, 0.9999
    %v49 = vmul.f32 %v45, 0.9999
    %v50 = vmul.f32 %v46, 0.9999
    %v51 = vld [vmem:[%s0] sm:$0xff]
    %v52 = vld [vmem:[%s0 + $0x8] sm:$0xff]
    %v53 = vld [vmem:[%s0 + $0x10] sm:$0xff]
    %v54 = vld [vmem:[%s0 + $0x18] sm:$0xff]
    %v55 = vmul.f32 %v51, 0.0005
    %v56 = vmul.f32 %v52, 0.0005
    %v57 = vmul.f32 %v53, 0.0005
    %v58 = vmul.f32 %v54, 0.0005
    %v59 = vadd.f32 %v55, -0.007
    %v60 = vadd.f32 %v56, -0.007
    %v61 = vadd.f32 %v57, -0.007
    %v62 = vadd.f32 %v58, -0.007
    %v63 = vadd.f32 %v47, %v59
    %v64 = vadd.f32 %v48, %v60
    %v65 = vadd.f32 %v49, %v61
    %v66 = vadd.f32 %v50, %v62
    %v67 = vld [vmem:[%s1] sm:$0xff]
    %v68 = vld [vmem:[%s1 + $0x8] sm:$0xff]
    %v69 = vld [vmem:[%s1 + $0x10] sm:$0xff]
    %v70 = vld [vmem:[%s1 + $0x18] sm:$0xff]
    %v71 = vadd.f32 %v63, %v67
    %v72 = vadd.f32 %v64, %v68
    %v73 = vadd.f32 %v65, %v69
    %v74 = vadd.f32 %v66, %v70
    %vm75 = vcmp.gt.f32.partialorder %v71, -50.0
    %vm76 = vcmp.gt.f32.partialorder %v72, -50.0
    %vm77 = vcmp.gt.f32.partialorder %v73, -50.0
    %vm78 = vcmp.gt.f32.partialorder %v74, -50.0
    %v79 = vsel %vm75, 1, 0
    %v80 = vsel %vm76, 1, 0
    %v81 = vsel %vm77, 1, 0
    %v82 = vsel %vm78, 1, 0
    %v83 = vcvt.s32.f32 %v79
    %v84 = vcvt.s32.f32 %v80
    %v85 = vcvt.s32.f32 %v81
    %v86 = vcvt.s32.f32 %v82
    %87 = vst [vmem:[#allocation4] sm:$0xff] %v71
    %88 = vst [vmem:[#allocation4 + $0x8] sm:$0xff] %v72
    %89 = vst [vmem:[#allocation4 + $0x10] sm:$0xff] %v73
    %90 = vst [vmem:[#allocation4 + $0x18] sm:$0xff] %v74
    %v91 = vsel %vm75, -70.0, %v71
    %v92 = vsel %vm76, -70.0, %v72
    %v93 = vsel %vm77, -70.0, %v73
    %v94 = vsel %vm78, -70.0, %v74
    %95 = vst [vmem:[%s5] sm:$0xff] %v91
    %96 = vst [vmem:[%s5 + $0x8] sm:$0xff] %v92
    %97 = vst [vmem:[%s5 + $0x10] sm:$0xff] %v93
    %98 = vst [vmem:[%s5 + $0x18] sm:$0xff] %v94
    %v99 = vld [vmem:[%s7] sm:$0xff]
    %v100 = vld [vmem:[%s7 + $0x8] sm:$0xff]
    %v101 = vld [vmem:[%s7 + $0x10] sm:$0xff]
    %v102 = vld [vmem:[%s7 + $0x18] sm:$0xff]
    %v103 = vmul.f32 %v99, 0.9999
    %v104 = vmul.f32 %v100, 0.9999
    %v105 = vmul.f32 %v101, 0.9999
    %v106 = vmul.f32 %v102, 0.9999
    %v107 = vadd.f32 %v103, %v83
    %v108 = vadd.f32 %v104, %v84
    %v109 = vadd.f32 %v105, %v85
    %v110 = vadd.f32 %v106, %v86
    %111 = vst [vmem:[%s7] sm:$0xff] %v107
    %112 = vst [vmem:[%s7 + $0x8] sm:$0xff] %v108
    %113 = vst [vmem:[%s7 + $0x10] sm:$0xff] %v109
    %114 = vst [vmem:[%s7 + $0x18] sm:$0xff] %v110
    %v115 = vtrunc.f32 %v83
    %v116 = vtrunc.f32 %v84
    %v117 = vtrunc.f32 %v85
    %v118 = vtrunc.f32 %v86
    %v119 = vpack.c.f32.eXmY %v115, %v116, 312
    %v123 = vpack.c.f32.eXmY %v117, %v118, 312
    %v127 = vpack.c.b8 %v123, %v119
    %129 = vst [vmem:[#allocation2] sm:$0xff] %v127
    // Predicated region
    $region22: #{step_fn.1} parent=1 // pred_check
      _
    $region23: #{step_fn.1} parent=1 // pred_check_branch
      %131 = sbr.rel (0) target = $region25
    $region24: #{step_fn.1} parent=1 // pred_region
      %s133 = ssub.s32 128, 128
      %134 = vsyncadd [#allocation3], %s133
      %s136 = sshll.u32 [#allocation2], 4
      %s137 = int_to_ptr.vmem [resolvable:$true] %s136
      %139 = dma.vmem_to_hbm [thread:$0]  %s137, 128, %s4, [#allocation3]
    $region25: #{step_fn.1} parent=1 // pred_fallthru
      _
    // Predicated region
    $region26: #{step_fn.1} parent=1 // pred_check
      _
    $region27: #{step_fn.1} parent=1 // pred_check_branch
      %141 = sbr.rel (0) target = $region29
    $region28: #{step_fn.1} parent=1 // pred_region
      _
    $region29: #{step_fn.1} parent=1 // pred_fallthru
      _
    // Predicated region
    $region30: #{step_fn.1} parent=1 // pred_check
      _
    $region31: #{step_fn.1} parent=1 // pred_check_branch
      %143 = sbr.rel (0) target = $region33
    $region32: #{step_fn.1} parent=1 // pred_region
      %s145 = ssub.s32 512, 512
      %146 = vsyncadd [#allocation5], %s145
      %s147 = sshll.u32 [#allocation4], 4
      %s148 = int_to_ptr.vmem [resolvable:$true] %s147
      %153 = dma.vmem_to_hbm [thread:$0]  %s148, 512, %s6, [#allocation5], 128, 128, 8
    $region33: #{step_fn.1} parent=1 // pred_fallthru
      _
    // Predicated region
    $region34: #{step_fn.1} parent=1 // pred_check
      _
    $region35: #{step_fn.1} parent=1 // pred_check_branch
      %155 = sbr.rel (0) target = $region37
    $region36: #{step_fn.1} parent=1 // pred_region
      _
    $region37: #{step_fn.1} parent=1 // pred_fallthru
      _
    // Predicated region
    $region38: #{step_fn.1} parent=1 // pred_check
      _
    $region39: #{step_fn.1} parent=1 // pred_check_branch
      %157 = sbr.rel (0) target = $region41
    $region40: #{step_fn.1} parent=1 // pred_region
      %158 = dma.done [#allocation3], 128
    $region41: #{step_fn.1} parent=1 // pred_fallthru
      _
    // Predicated region
    $region42: #{step_fn.1} parent=1 // pred_check
      _
    $region43: #{step_fn.1} parent=1 // pred_check_branch
      %160 = sbr.rel (0) target = $region45
    $region44: #{step_fn.1} parent=1 // pred_region
      _
    $region45: #{step_fn.1} parent=1 // pred_fallthru
      _
    // Predicated region
    $region46: #{step_fn.1} parent=1 // pred_check
      _
    $region47: #{step_fn.1} parent=1 // pred_check_branch
      %162 = sbr.rel (0) target = $region49
    $region48: #{step_fn.1} parent=1 // pred_region
      %163 = dma.done [#allocation5], 512
    $region49: #{step_fn.1} parent=1 // pred_fallthru
      _
    // Predicated region
    $region50: #{step_fn.1} parent=1 // pred_check
      _
    $region51: #{step_fn.1} parent=1 // pred_check_branch
      %165 = sbr.rel (0) target = $region53
    $region52: #{step_fn.1} parent=1 // pred_region
      _
    $region53: #{step_fn.1} parent=1 // pred_fallthru
      _
    %166 = vsyncpa [#allocation3], 1
    %167 = vsyncpa [#allocation5], 1

</llo_original>
